<compile_context>
chip_gen: v6e
topology: v6e:2x2x1
jax: 0.10.0
libtpu: 0.0.40
codegen_flags: <defaults>
</compile_context>

<pallas_src>
import math

import jax
import jax.numpy as jnp
import numpy as np
from jax.experimental import pallas as pl
from jax.experimental.pallas import tpu as pltpu

VALUE_DIM = 128   # width of `value` (module hard-codes 128 + 16)
MU_HID = 16       # mu_fc hidden width
HID = 128         # network_fc hidden width
LANE = 128        # TPU lane width; narrow dims padded to this


# ------------------------------- Pallas kernel ------------------------------ #

def _meta_critic_kernel(value_ref, mu_ref,
                        wmu_ref, bmu_ref,
                        w1a_ref, w1b_ref, b1_ref,
                        w2_ref, b2_ref,
                        w3_ref, b3_ref,
                        out_ref):
    # value_ref: (BB, 128)   mu_ref: (BB, D)
    v = value_ref[...]
    m = mu_ref[...]

    # mu_fc: tanh(mu @ Wmu + bmu).  Columns 16..127 are zero-padded (tanh(0)=0).
    h_mu = jnp.tanh(jnp.dot(m, wmu_ref[...], preferred_element_type=jnp.float32)
                    + bmu_ref[...])

    # cat([value, h_mu]) @ W1^T  ==  value @ W1a + h_mu @ W1b   (concat avoided;
    # W1b rows 16..127 are zero so the padded h_mu lanes contribute nothing).
    h1 = jnp.tanh(jnp.dot(v, w1a_ref[...], preferred_element_type=jnp.float32)
                  + jnp.dot(h_mu, w1b_ref[...], preferred_element_type=jnp.float32)
                  + b1_ref[...])

    h2 = jnp.tanh(jnp.dot(h1, w2_ref[...], preferred_element_type=jnp.float32)
                  + b2_ref[...])

    # Final linear; W3/b3 are zero beyond column 0, so padded output columns are 0
    # and the (BB, 128) store stays lane-dense / unmasked.
    out_ref[...] = (jnp.dot(h2, w3_ref[...], preferred_element_type=jnp.float32)
                    + b3_ref[...])


# ------------------------------ Host-side glue ------------------------------ #

def meta_critic_forward(params, value, mu):
    B, vdim = value.shape
    assert vdim == VALUE_DIM
    D = mu.shape[1]
    f32 = jnp.float32

    # Weight plumbing: x @ W layout; pad narrow dims to 128 lanes with exact zeros.
    wmu = jnp.zeros((D, LANE), f32).at[:, :MU_HID].set(params["mu_w"].T)
    bmu = jnp.zeros((1, LANE), f32).at[:, :MU_HID].set(params["mu_b"][None, :])

    w1 = params["fc1_w"]                                           # (128, 144)
    w1a = jnp.asarray(w1[:, :VALUE_DIM].T, f32)                    # (128, 128) value part
    w1b = jnp.zeros((LANE, HID), f32).at[:MU_HID, :].set(w1[:, VALUE_DIM:].T)
    b1 = jnp.asarray(params["fc1_b"][None, :], f32)                # (1, 128)

    w2 = jnp.asarray(params["fc2_w"].T, f32)                       # (128, 128)
    b2 = jnp.asarray(params["fc2_b"][None, :], f32)                # (1, 128)

    w3 = jnp.zeros((HID, LANE), f32).at[:, :1].set(params["fc3_w"].T)   # (128, 128)
    b3 = jnp.zeros((1, LANE), f32).at[:, :1].set(params["fc3_b"][None, :])

    # Batch tiling: up to 128 rows per grid step; pad B with zero rows if needed.
    if B <= 128:
        BB, Bp = B, B
        value_p, mu_p = value, mu
    else:
        BB = 128
        Bp = pl.cdiv(B, BB) * BB
        value_p = jnp.pad(value, ((0, Bp - B), (0, 0)))
        mu_p = jnp.pad(mu, ((0, Bp - B), (0, 0)))

    out = pl.pallas_call(
        _meta_critic_kernel,
        out_shape=jax.ShapeDtypeStruct((Bp, LANE), jnp.float32),
        grid=(Bp // BB,),
        in_specs=[
            pl.BlockSpec((BB, VALUE_DIM), lambda i: (i, 0)),   # value
            pl.BlockSpec((BB, D), lambda i: (i, 0)),           # mu
            pl.BlockSpec((D, LANE), lambda i: (0, 0)),         # wmu (padded)
            pl.BlockSpec((1, LANE), lambda i: (0, 0)),         # bmu (padded)
            pl.BlockSpec((VALUE_DIM, HID), lambda i: (0, 0)),  # w1a
            pl.BlockSpec((LANE, HID), lambda i: (0, 0)),       # w1b (padded rows)
            pl.BlockSpec((1, HID), lambda i: (0, 0)),          # b1
            pl.BlockSpec((HID, HID), lambda i: (0, 0)),        # w2
            pl.BlockSpec((1, HID), lambda i: (0, 0)),          # b2
            pl.BlockSpec((HID, LANE), lambda i: (0, 0)),       # w3 (padded cols)
            pl.BlockSpec((1, LANE), lambda i: (0, 0)),         # b3 (padded cols)
        ],
        out_specs=pl.BlockSpec((BB, LANE), lambda i: (i, 0)),
        compiler_params=pltpu.CompilerParams(
            dimension_semantics=("parallel",)),
    )(value_p, mu_p, wmu, bmu, w1a, w1b, b1, w2, b2, w3, b3)

    # Column 0 carries the critic value; padded columns are exactly zero.
    return out[:B, :1]


# --------------------------- params / reference ----------------------------- #

def init_params(key, d_rand):
    # NOTE: PyTorch uses orthogonal init + zero bias; init values do not affect
    # forward-pass semantics, so a simple uniform init is used for the smoke test.
    ks = jax.random.split(key, 8)

    def uni(k, shape, bound):
        return jax.random.uniform(k, shape, jnp.float32, -bound, bound)

    return dict(
        mu_w=uni(ks[0], (MU_HID, d_rand), math.sqrt(2.0 / max(d_rand, 1))),
        mu_b=uni(ks[1], (MU_HID,), 0.1),
        fc1_w=uni(ks[2], (HID, VALUE_DIM + MU_HID), math.sqrt(2.0 / (VALUE_DIM + MU_HID))),
        fc1_b=uni(ks[3], (HID,), 0.1),
        fc2_w=uni(ks[4], (HID, HID), math.sqrt(2.0 / HID)),
        fc2_b=uni(ks[5], (HID,), 0.1),
        fc3_w=uni(ks[6], (1, HID), 1.0 / math.sqrt(HID)),
        fc3_b=uni(ks[7], (1,), 0.1),
    )


def reference_forward(params, value, mu):
    """Pure-JAX mirror of MetaCritic.forward (for correctness check)."""
    h_mu = jnp.tanh(mu @ params["mu_w"].T + params["mu_b"])
    combined = jnp.concatenate([value, h_mu], axis=1)
    h1 = jnp.tanh(combined @ params["fc1_w"].T + params["fc1_b"])
    h2 = jnp.tanh(h1 @ params["fc2_w"].T + params["fc2_b"])
    return h2 @ params["fc3_w"].T + params["fc3_b"]


if __name__ == "__main__":
    D = 8      # domain_randomization_size
    B = 2
    key = jax.random.PRNGKey(0)
    k_par, k_val, k_mu = jax.random.split(key, 3)

    params = init_params(k_par, D)
    value = jax.random.normal(k_val, (B, VALUE_DIM), jnp.float32)
    mu = jax.random.normal(k_mu, (B, D), jnp.float32)

    out = jax.block_until_ready(meta_critic_forward(params, value, mu))
    ref = jax.block_until_ready(reference_forward(params, value, mu))

    assert out.shape == (B, 1)
    np.testing.assert_allclose(np.asarray(out), np.asarray(ref), rtol=2e-3, atol=2e-3)

    print("KERNEL_OK")
</pallas_src>

<mosaic_0001>
module attributes {stable_mosaic.version = 11 : i64} {
  func.func @_meta_critic_kernel(%arg0: i32, %arg1: memref<2x128xf32, #tpu.memory_space<vmem>>, %arg2: memref<2x8xf32, #tpu.memory_space<vmem>>, %arg3: memref<8x128xf32, #tpu.memory_space<vmem>>, %arg4: memref<1x128xf32, #tpu.memory_space<vmem>>, %arg5: memref<128x128xf32, #tpu.memory_space<vmem>>, %arg6: memref<128x128xf32, #tpu.memory_space<vmem>>, %arg7: memref<1x128xf32, #tpu.memory_space<vmem>>, %arg8: memref<128x128xf32, #tpu.memory_space<vmem>>, %arg9: memref<1x128xf32, #tpu.memory_space<vmem>>, %arg10: memref<128x128xf32, #tpu.memory_space<vmem>>, %arg11: memref<1x128xf32, #tpu.memory_space<vmem>>, %arg12: memref<2x128xf32, #tpu.memory_space<vmem>>) attributes {dimension_semantics = [#tpu.dimension_semantics<parallel>], iteration_bounds = array<i64: 1>, scalar_prefetch = 0 : i64, scratch_operands = 0 : i64, tpu.core_type = #tpu.core_type<tc>, window_params = [{transform_indices = @transform_0, window_bounds = array<i64: 2, 128>}, {transform_indices = @transform_1, window_bounds = array<i64: 2, 8>}, {pipeline_mode = #tpu.pipeline_mode<synchronous>, transform_indices = @transform_2, window_bounds = array<i64: 8, 128>}, {pipeline_mode = #tpu.pipeline_mode<synchronous>, transform_indices = @transform_3, window_bounds = array<i64: 1, 128>}, {pipeline_mode = #tpu.pipeline_mode<synchronous>, transform_indices = @transform_4, window_bounds = array<i64: 128, 128>}, {pipeline_mode = #tpu.pipeline_mode<synchronous>, transform_indices = @transform_5, window_bounds = array<i64: 128, 128>}, {pipeline_mode = #tpu.pipeline_mode<synchronous>, transform_indices = @transform_6, window_bounds = array<i64: 1, 128>}, {pipeline_mode = #tpu.pipeline_mode<synchronous>, transform_indices = @transform_7, window_bounds = array<i64: 128, 128>}, {pipeline_mode = #tpu.pipeline_mode<synchronous>, transform_indices = @transform_8, window_bounds = array<i64: 1, 128>}, {pipeline_mode = #tpu.pipeline_mode<synchronous>, transform_indices = @transform_9, window_bounds = array<i64: 128, 128>}, {pipeline_mode = #tpu.pipeline_mode<synchronous>, transform_indices = @transform_10, window_bounds = array<i64: 1, 128>}, {transform_indices = @transform_11, window_bounds = array<i64: 2, 128>}]} {
    %c0 = arith.constant 0 : index
    %c0_0 = arith.constant 0 : index
    %0 = vector.load %arg1[%c0, %c0_0] : memref<2x128xf32, #tpu.memory_space<vmem>>, vector<2x128xf32>
    %c0_1 = arith.constant 0 : index
    %c0_2 = arith.constant 0 : index
    %1 = vector.load %arg2[%c0_1, %c0_2] : memref<2x8xf32, #tpu.memory_space<vmem>>, vector<2x8xf32>
    %c0_3 = arith.constant 0 : index
    %c0_4 = arith.constant 0 : index
    %2 = vector.load %arg3[%c0_3, %c0_4] : memref<8x128xf32, #tpu.memory_space<vmem>>, vector<8x128xf32>
    %cst = arith.constant dense<0.000000e+00> : vector<2x128xf32>
    %3 = tpu.matmul %1, %2, %cst {dimension_numbers = #tpu.dot_dimension_numbers<[1], [0], [0], [1], [0, 0, 1, 1], [], []>} : vector<2x8xf32>, vector<8x128xf32>, vector<2x128xf32> -> vector<2x128xf32>
    %c0_5 = arith.constant 0 : index
    %c0_6 = arith.constant 0 : index
    %4 = vector.load %arg4[%c0_5, %c0_6] : memref<1x128xf32, #tpu.memory_space<vmem>>, vector<1x128xf32>
    %5 = vector.broadcast %4 : vector<1x128xf32> to vector<2x128xf32>
    %6 = arith.addf %3, %5 : vector<2x128xf32>
    %7 = math.tanh %6 : vector<2x128xf32>
    %c0_7 = arith.constant 0 : index
    %c0_8 = arith.constant 0 : index
    %8 = vector.load %arg5[%c0_7, %c0_8] : memref<128x128xf32, #tpu.memory_space<vmem>>, vector<128x128xf32>
    %cst_9 = arith.constant dense<0.000000e+00> : vector<2x128xf32>
    %9 = tpu.matmul %0, %8, %cst_9 {dimension_numbers = #tpu.dot_dimension_numbers<[1], [0], [0], [1], [0, 0, 1, 1], [], []>} : vector<2x128xf32>, vector<128x128xf32>, vector<2x128xf32> -> vector<2x128xf32>
    %c0_10 = arith.constant 0 : index
    %c0_11 = arith.constant 0 : index
    %10 = vector.load %arg6[%c0_10, %c0_11] : memref<128x128xf32, #tpu.memory_space<vmem>>, vector<128x128xf32>
    %cst_12 = arith.constant dense<0.000000e+00> : vector<2x128xf32>
    %11 = tpu.matmul %7, %10, %cst_12 {dimension_numbers = #tpu.dot_dimension_numbers<[1], [0], [0], [1], [0, 0, 1, 1], [], []>} : vector<2x128xf32>, vector<128x128xf32>, vector<2x128xf32> -> vector<2x128xf32>
    %12 = arith.addf %9, %11 : vector<2x128xf32>
    %c0_13 = arith.constant 0 : index
    %c0_14 = arith.constant 0 : index
    %13 = vector.load %arg7[%c0_13, %c0_14] : memref<1x128xf32, #tpu.memory_space<vmem>>, vector<1x128xf32>
    %14 = vector.broadcast %13 : vector<1x128xf32> to vector<2x128xf32>
    %15 = arith.addf %12, %14 : vector<2x128xf32>
    %16 = math.tanh %15 : vector<2x128xf32>
    %c0_15 = arith.constant 0 : index
    %c0_16 = arith.constant 0 : index
    %17 = vector.load %arg8[%c0_15, %c0_16] : memref<128x128xf32, #tpu.memory_space<vmem>>, vector<128x128xf32>
    %cst_17 = arith.constant dense<0.000000e+00> : vector<2x128xf32>
    %18 = tpu.matmul %16, %17, %cst_17 {dimension_numbers = #tpu.dot_dimension_numbers<[1], [0], [0], [1], [0, 0, 1, 1], [], []>} : vector<2x128xf32>, vector<128x128xf32>, vector<2x128xf32> -> vector<2x128xf32>
    %c0_18 = arith.constant 0 : index
    %c0_19 = arith.constant 0 : index
    %19 = vector.load %arg9[%c0_18, %c0_19] : memref<1x128xf32, #tpu.memory_space<vmem>>, vector<1x128xf32>
    %20 = vector.broadcast %19 : vector<1x128xf32> to vector<2x128xf32>
    %21 = arith.addf %18, %20 : vector<2x128xf32>
    %22 = math.tanh %21 : vector<2x128xf32>
    %c0_20 = arith.constant 0 : index
    %c0_21 = arith.constant 0 : index
    %23 = vector.load %arg10[%c0_20, %c0_21] : memref<128x128xf32, #tpu.memory_space<vmem>>, vector<128x128xf32>
    %cst_22 = arith.constant dense<0.000000e+00> : vector<2x128xf32>
    %24 = tpu.matmul %22, %23, %cst_22 {dimension_numbers = #tpu.dot_dimension_numbers<[1], [0], [0], [1], [0, 0, 1, 1], [], []>} : vector<2x128xf32>, vector<128x128xf32>, vector<2x128xf32> -> vector<2x128xf32>
    %c0_23 = arith.constant 0 : index
    %c0_24 = arith.constant 0 : index
    %25 = vector.load %arg11[%c0_23, %c0_24] : memref<1x128xf32, #tpu.memory_space<vmem>>, vector<1x128xf32>
    %26 = vector.broadcast %25 : vector<1x128xf32> to vector<2x128xf32>
    %27 = arith.addf %24, %26 : vector<2x128xf32>
    %c0_25 = arith.constant 0 : index
    %c0_26 = arith.constant 0 : index
    %28 = vector.load %arg12[%c0_25, %c0_26] : memref<2x128xf32, #tpu.memory_space<vmem>>, vector<2x128xf32>
    tpu.vector_store %arg12[%c0_25, %c0_26], %27 {strides = array<i32>} : memref<2x128xf32, #tpu.memory_space<vmem>>, vector<2x128xf32>,
    return
  }
  func.func @transform_0(%arg0: i32) -> (i32, i32) {
    %c0_i32 = arith.constant 0 : i32
    %c0_i32_0 = arith.constant 0 : i32
    return %arg0, %c0_i32 : i32, i32
  }
  func.func @transform_1(%arg0: i32) -> (i32, i32) {
    %c0_i32 = arith.constant 0 : i32
    %c0_i32_0 = arith.constant 0 : i32
    return %arg0, %c0_i32 : i32, i32
  }
  func.func @transform_2(%arg0: i32) -> (i32, i32) {
    %c0_i32 = arith.constant 0 : i32
    %c0_i32_0 = arith.constant 0 : i32
    %c0_i32_1 = arith.constant 0 : i32
    return %c0_i32, %c0_i32_0 : i32, i32
  }
  func.func @transform_3(%arg0: i32) -> (i32, i32) {
    %c0_i32 = arith.constant 0 : i32
    %c0_i32_0 = arith.constant 0 : i32
    %c0_i32_1 = arith.constant 0 : i32
    return %c0_i32, %c0_i32_0 : i32, i32
  }
  func.func @transform_4(%arg0: i32) -> (i32, i32) {
    %c0_i32 = arith.constant 0 : i32
    %c0_i32_0 = arith.constant 0 : i32
    %c0_i32_1 = arith.constant 0 : i32
    return %c0_i32, %c0_i32_0 : i32, i32
  }
  func.func @transform_5(%arg0: i32) -> (i32, i32) {
    %c0_i32 = arith.constant 0 : i32
    %c0_i32_0 = arith.constant 0 : i32
    %c0_i32_1 = arith.constant 0 : i32
    return %c0_i32, %c0_i32_0 : i32, i32
  }
  func.func @transform_6(%arg0: i32) -> (i32, i32) {
    %c0_i32 = arith.constant 0 : i32
    %c0_i32_0 = arith.constant 0 : i32
    %c0_i32_1 = arith.constant 0 : i32
    return %c0_i32, %c0_i32_0 : i32, i32
  }
  func.func @transform_7(%arg0: i32) -> (i32, i32) {
    %c0_i32 = arith.constant 0 : i32
    %c0_i32_0 = arith.constant 0 : i32
    %c0_i32_1 = arith.constant 0 : i32
    return %c0_i32, %c0_i32_0 : i32, i32
  }
  func.func @transform_8(%arg0: i32) -> (i32, i32) {
    %c0_i32 = arith.constant 0 : i32
    %c0_i32_0 = arith.constant 0 : i32
    %c0_i32_1 = arith.constant 0 : i32
    return %c0_i32, %c0_i32_0 : i32, i32
  }
  func.func @transform_9(%arg0: i32) -> (i32, i32) {
    %c0_i32 = arith.constant 0 : i32
    %c0_i32_0 = arith.constant 0 : i32
    %c0_i32_1 = arith.constant 0 : i32
    return %c0_i32, %c0_i32_0 : i32, i32
  }
  func.func @transform_10(%arg0: i32) -> (i32, i32) {
    %c0_i32 = arith.constant 0 : i32
    %c0_i32_0 = arith.constant 0 : i32
    %c0_i32_1 = arith.constant 0 : i32
    return %c0_i32, %c0_i32_0 : i32, i32
  }
  func.func @transform_11(%arg0: i32) -> (i32, i32) {
    %c0_i32 = arith.constant 0 : i32
    %c0_i32_0 = arith.constant 0 : i32
    return %arg0, %c0_i32 : i32, i32
  }
}

</mosaic_0001>

<llo_original>
// kernel: tpu_custom_call.1
$region0: #{tpu_custom_call.1}
  #allocation0 [shape = 'u32[]', space=smem, size = 0x4, offset = 0x4, fixed_abs, tag = 'smem constant byte address 0x4 - core index']
  #allocation1 [shape = 'u32[144,128]{1,0:T(1,128)}', space=vmem, size = 0x12000, scoped, tag = 'internal scratch']
  %s0 = inlined_call_operand.hbm [shape: f32[2,128], index: 0, kind: input, shape index: {}]
  %s1 = inlined_call_operand.hbm [shape: f32[2,8], index: 1, kind: input, shape index: {}]
  %s2 = inlined_call_operand.hbm [shape: f32[8,128], index: 2, kind: input, shape index: {}]
  %s3 = inlined_call_operand.vmem [shape: f32[1,128], index: 3, kind: input, shape index: {}]
  %s4 = inlined_call_operand.hbm [shape: f32[128,128], index: 4, kind: input, shape index: {}]
  %s5 = inlined_call_operand.hbm [shape: f32[128,128], index: 5, kind: input, shape index: {}]
  %s6 = inlined_call_operand.vmem [shape: f32[1,128], index: 6, kind: input, shape index: {}]
  %s7 = inlined_call_operand.hbm [shape: f32[128,128], index: 7, kind: input, shape index: {}]
  %s8 = inlined_call_operand.vmem [shape: f32[1,128], index: 8, kind: input, shape index: {}]
  %s9 = inlined_call_operand.hbm [shape: f32[128,128], index: 9, kind: input, shape index: {}]
  %s10 = inlined_call_operand.vmem [shape: f32[1,128], index: 10, kind: input, shape index: {}]
  %s11 = inlined_call_operand.hbm [shape: f32[2,128], index: 11, kind: output, shape index: {}]
  %s12 = sld [smem:[#allocation0]]
  $region82: #{tpu_custom_call.1} parent=0
    _
  %s14 = ssub.s32 1, %s12
  %s15 = scalar_select 0, %s14, %s12
  $region1: #{tpu_custom_call.1} parent=0
    #allocation2 [shape = 'u8[1024]{0}', space=vmem, size = 0x400, scoped, tag = 'input window, operand 0, single buffered']
    #allocation3 [shape = 's32[1]{0}', space=sflag, size = 0x4, scoped, tag = 'scoped memory for tpu_custom_call.1']
    #allocation4 [shape = 's32[1]{0}', space=sflag, size = 0x4, scoped, tag = 'scoped memory for tpu_custom_call.1']
    #allocation5 [shape = 'u8[1024]{0}', space=vmem, size = 0x400, scoped, tag = 'input window, operand 1, single buffered']
    #allocation6 [shape = 's32[1]{0}', space=sflag, size = 0x4, scoped, tag = 'scoped memory for tpu_custom_call.1']
    #allocation7 [shape = 'u8[4096]{0}', space=vmem, size = 0x1000, scoped, tag = 'input window, operand 2, single buffered']
    #allocation8 [shape = 'u8[65536]{0}', space=vmem, size = 0x10000, scoped, tag = 'input window, operand 4, single buffered']
    #allocation9 [shape = 's32[1]{0}', space=sflag, size = 0x4, scoped, tag = 'scoped memory for tpu_custom_call.1']
    #allocation10 [shape = 'u8[65536]{0}', space=vmem, size = 0x10000, scoped, tag = 'input window, operand 5, single buffered']
    #allocation11 [shape = 'u8[65536]{0}', space=vmem, size = 0x10000, scoped, tag = 'input window, operand 7, single buffered']
    #allocation12 [shape = 's32[1]{0}', space=sflag, size = 0x4, scoped, tag = 'scoped memory for tpu_custom_call.1']
    #allocation13 [shape = 'u8[65536]{0}', space=vmem, size = 0x10000, scoped, tag = 'input window, operand 9, single buffered']
    #allocation14 [shape = 'u8[1024]{0}', space=vmem, size = 0x400, scoped, tag = 'output window, operand 0, single buffered']
    %16 = vsyncpa [#allocation3], 0
    %17 = vsyncpa [#allocation6], 0
    %18 = vsyncpa [#allocation9], 0
    %19 = vsyncpa [#allocation12], 0
    %20 = vsyncpa [#allocation4], 0
    // Predicated region
    $region2: #{tpu_custom_call.1} parent=1 // pred_check
      _
    $region3: #{tpu_custom_call.1} parent=1 // pred_check_branch
      %22 = sbr.rel (0) target = $region5
    $region4: #{tpu_custom_call.1} parent=1 // pred_region
      %s24 = ssub.s32 32, 32
      %25 = vsyncadd [#allocation3], %s24
      %s27 = sshll.u32 [#allocation2], 4
      %s28 = int_to_ptr.vmem [resolvable:$true] %s27
      %30 = dma.hbm_to_vmem [thread:$0]  %s0, 32, %s28, [#allocation3]
    $region5: #{tpu_custom_call.1} parent=1 // pred_fallthru
      _
    // Predicated region
    $region6: #{tpu_custom_call.1} parent=1 // pred_check
      _
    $region7: #{tpu_custom_call.1} parent=1 // pred_check_branch
      %32 = sbr.rel (0) target = $region9
    $region8: #{tpu_custom_call.1} parent=1 // pred_region
      %s34 = ssub.s32 32, 32
      %35 = vsyncadd [#allocation6], %s34
      %s37 = sshll.u32 [#allocation5], 4
      %s38 = int_to_ptr.vmem [resolvable:$true] %s37
      %40 = dma.hbm_to_vmem [thread:$0]  %s1, 32, %s38, [#allocation6]
    $region9: #{tpu_custom_call.1} parent=1 // pred_fallthru
      _
    // Predicated region
    $region10: #{tpu_custom_call.1} parent=1 // pred_check
      _
    $region11: #{tpu_custom_call.1} parent=1 // pred_check_branch
      %42 = sbr.rel (0) target = $region13
    $region12: #{tpu_custom_call.1} parent=1 // pred_region
      %s44 = ssub.s32 128, 128
      %45 = vsyncadd [#allocation6], %s44
      %s47 = sshll.u32 [#allocation7], 4
      %s48 = int_to_ptr.vmem [resolvable:$true] %s47
      %50 = dma.hbm_to_vmem [thread:$0]  %s2, 128, %s48, [#allocation6]
    $region13: #{tpu_custom_call.1} parent=1 // pred_fallthru
      _
    // Predicated region
    $region14: #{tpu_custom_call.1} parent=1 // pred_check
      _
    $region15: #{tpu_custom_call.1} parent=1 // pred_check_branch
      %52 = sbr.rel (0) target = $region17
    $region16: #{tpu_custom_call.1} parent=1 // pred_region
      _
    $region17: #{tpu_custom_call.1} parent=1 // pred_fallthru
      _
    // Predicated region
    $region18: #{tpu_custom_call.1} parent=1 // pred_check
      _
    $region19: #{tpu_custom_call.1} parent=1 // pred_check_branch
      %54 = sbr.rel (0) target = $region21
    $region20: #{tpu_custom_call.1} parent=1 // pred_region
      %s56 = ssub.s32 2048, 2048
      %57 = vsyncadd [#allocation9], %s56
      %s58 = sshll.u32 [#allocation8], 4
      %s59 = int_to_ptr.vmem [resolvable:$true] %s58
      %64 = dma.hbm_to_vmem [thread:$0]  %s4, 2048, %s59, [#allocation9], 128, 128, 8
    $region21: #{tpu_custom_call.1} parent=1 // pred_fallthru
      _
    // Predicated region
    $region22: #{tpu_custom_call.1} parent=1 // pred_check
      _
    $region23: #{tpu_custom_call.1} parent=1 // pred_check_branch
      %66 = sbr.rel (0) target = $region25
    $region24: #{tpu_custom_call.1} parent=1 // pred_region
      %s68 = ssub.s32 2048, 2048
      %69 = vsyncadd [#allocation9], %s68
      %s70 = sshll.u32 [#allocation10], 4
      %s71 = int_to_ptr.vmem [resolvable:$true] %s70
      %76 = dma.hbm_to_vmem [thread:$0]  %s5, 2048, %s71, [#allocation9], 128, 128, 8
    $region25: #{tpu_custom_call.1} parent=1 // pred_fallthru
      _
    // Predicated region
    $region26: #{tpu_custom_call.1} parent=1 // pred_check
      _
    $region27: #{tpu_custom_call.1} parent=1 // pred_check_branch
      %78 = sbr.rel (0) target = $region29
    $region28: #{tpu_custom_call.1} parent=1 // pred_region
      _
    $region29: #{tpu_custom_call.1} parent=1 // pred_fallthru
      _
    // Predicated region
    $region30: #{tpu_custom_call.1} parent=1 // pred_check
      _
    $region31: #{tpu_custom_call.1} parent=1 // pred_check_branch
      %80 = sbr.rel (0) target = $region33
    $region32: #{tpu_custom_call.1} parent=1 // pred_region
      %s82 = ssub.s32 2048, 2048
      %83 = vsyncadd [#allocation12], %s82
      %s84 = sshll.u32 [#allocation11], 4
      %s85 = int_to_ptr.vmem [resolvable:$true] %s84
      %90 = dma.hbm_to_vmem [thread:$0]  %s7, 2048, %s85, [#allocation12], 128, 128, 8
    $region33: #{tpu_custom_call.1} parent=1 // pred_fallthru
      _
    // Predicated region
    $region34: #{tpu_custom_call.1} parent=1 // pred_check
      _
    $region35: #{tpu_custom_call.1} parent=1 // pred_check_branch
      %92 = sbr.rel (0) target = $region37
    $region36: #{tpu_custom_call.1} parent=1 // pred_region
      _
    $region37: #{tpu_custom_call.1} parent=1 // pred_fallthru
      _
    // Predicated region
    $region38: #{tpu_custom_call.1} parent=1 // pred_check
      _
    $region39: #{tpu_custom_call.1} parent=1 // pred_check_branch
      %94 = sbr.rel (0) target = $region41
    $region40: #{tpu_custom_call.1} parent=1 // pred_region
      %s96 = ssub.s32 2048, 2048
      %97 = vsyncadd [#allocation12], %s96
      %s98 = sshll.u32 [#allocation13], 4
      %s99 = int_to_ptr.vmem [resolvable:$true] %s98
      %104 = dma.hbm_to_vmem [thread:$0]  %s9, 2048, %s99, [#allocation12], 128, 128, 8
    $region41: #{tpu_custom_call.1} parent=1 // pred_fallthru
      _
    // Predicated region
    $region42: #{tpu_custom_call.1} parent=1 // pred_check
      _
    $region43: #{tpu_custom_call.1} parent=1 // pred_check_branch
      %106 = sbr.rel (0) target = $region45
    $region44: #{tpu_custom_call.1} parent=1 // pred_region
      _
    $region45: #{tpu_custom_call.1} parent=1 // pred_fallthru
      _
    // Predicated region
    $region46: #{tpu_custom_call.1} parent=1 // pred_check
      _
    $region47: #{tpu_custom_call.1} parent=1 // pred_check_branch
      %108 = sbr.rel (0) target = $region49
    $region48: #{tpu_custom_call.1} parent=1 // pred_region
      %109 = dma.done [#allocation3], 32
    $region49: #{tpu_custom_call.1} parent=1 // pred_fallthru
      _
    // Predicated region
    $region50: #{tpu_custom_call.1} parent=1 // pred_check
      _
    $region51: #{tpu_custom_call.1} parent=1 // pred_check_branch
      %111 = sbr.rel (0) target = $region53
    $region52: #{tpu_custom_call.1} parent=1 // pred_region
      %112 = dma.done [#allocation6], 32
    $region53: #{tpu_custom_call.1} parent=1 // pred_fallthru
      _
    // Predicated region
    $region54: #{tpu_custom_call.1} parent=1 // pred_check
      _
    $region55: #{tpu_custom_call.1} parent=1 // pred_check_branch
      %114 = sbr.rel (0) target = $region57
    $region56: #{tpu_custom_call.1} parent=1 // pred_region
      %115 = dma.done [#allocation6], 128
    $region57: #{tpu_custom_call.1} parent=1 // pred_fallthru
      _
    // Predicated region
    $region58: #{tpu_custom_call.1} parent=1 // pred_check
      _
    $region59: #{tpu_custom_call.1} parent=1 // pred_check_branch
      %117 = sbr.rel (0) target = $region61
    $region60: #{tpu_custom_call.1} parent=1 // pred_region
      %118 = dma.done [#allocation9], 2048
    $region61: #{tpu_custom_call.1} parent=1 // pred_fallthru
      _
    // Predicated region
    $region62: #{tpu_custom_call.1} parent=1 // pred_check
      _
    $region63: #{tpu_custom_call.1} parent=1 // pred_check_branch
      %120 = sbr.rel (0) target = $region65
    $region64: #{tpu_custom_call.1} parent=1 // pred_region
      %121 = dma.done [#allocation9], 2048
    $region65: #{tpu_custom_call.1} parent=1 // pred_fallthru
      _
    // Predicated region
    $region66: #{tpu_custom_call.1} parent=1 // pred_check
      _
    $region67: #{tpu_custom_call.1} parent=1 // pred_check_branch
      %123 = sbr.rel (0) target = $region69
    $region68: #{tpu_custom_call.1} parent=1 // pred_region
      %124 = dma.done [#allocation12], 2048
    $region69: #{tpu_custom_call.1} parent=1 // pred_fallthru
      _
    // Predicated region
    $region70: #{tpu_custom_call.1} parent=1 // pred_check
      _
    $region71: #{tpu_custom_call.1} parent=1 // pred_check_branch
      %126 = sbr.rel (0) target = $region73
    $region72: #{tpu_custom_call.1} parent=1 // pred_region
      %127 = dma.done [#allocation12], 2048
    $region73: #{tpu_custom_call.1} parent=1 // pred_fallthru
      _
    %v128 = vld [vmem:[#allocation2] sm:$0x3]
    %v129 = vld [vmem:[#allocation5] sm:$0x3]
    %v130 = vld [vmem:[#allocation7] sm:$0xff]
    %v131 = vld [vmem:[%s3] sm:$0x1]
    %v133 = vlaneseq
    %v134 = vshrl.u32 %v133, 7
    %v135 = vsub.s32 0, %v134
    %v136 = vrot.slane %v131, %v135
    %vm138 = vcmask 64512
    %v140 = vsel %vm138, %v129, 0
    %142 = vmatprep.subr.mxu0 0.0
    %143 = vmatpush1.msra.mxu0 0.0
    %144 = vmatprep.subr.mxu0 0.0
    %145 = vmatpush1.msra.mxu0 0.0
    %146 = vmatprep.subr.mxu0 0.0
    %147 = vmatpush1.msra.mxu0 0.0
    %148 = vmatprep.subr.mxu0 0.0
    %149 = vmatpush1.msra.mxu0 0.0
    %150 = vmatprep.subr.mxu0 0.0
    %151 = vmatpush1.msra.mxu0 0.0
    %152 = vmatprep.subr.mxu0 0.0
    %153 = vmatpush1.msra.mxu0 0.0
    %154 = vmatprep.subr.mxu0 0.0
    %155 = vmatpush1.msra.mxu0 0.0
    %156 = vmatprep.subr.mxu0 0.0
    %157 = vmatpush1.msra.mxu0 0.0
    %158 = vmatprep.subr.mxu0 0.0
    %159 = vmatpush1.msra.mxu0 0.0
    %160 = vmatprep.subr.mxu0 0.0
    %161 = vmatpush1.msra.mxu0 0.0
    %162 = vmatprep.subr.mxu0 0.0
    %163 = vmatpush1.msra.mxu0 0.0
    %164 = vmatprep.subr.mxu0 0.0
    %165 = vmatpush1.msra.mxu0 0.0
    %166 = vmatprep.subr.mxu0 0.0
    %167 = vmatpush1.msra.mxu0 0.0
    %168 = vmatprep.subr.mxu0 0.0
    %169 = vmatpush1.msra.mxu0 0.0
    %170 = vmatprep.subr.mxu0 0.0
    %171 = vmatpush1.msra.mxu0 0.0
    %172 = vmatprep.subr.mxu0 0.0
    %173 = vmatpush1.msra.mxu0 %v130
    %174 = vmatprep.subr.mxu0 0.0
    %175 = vmatpush2.msra.mxu0 0.0
    %176 = vmatprep.subr.mxu0 0.0
    %177 = vmatpush2.msra.mxu0 0.0
    %178 = vmatprep.subr.mxu0 0.0
    %179 = vmatpush2.msra.mxu0 0.0
    %180 = vmatprep.subr.mxu0 0.0
    %181 = vmatpush2.msra.mxu0 0.0
    %182 = vmatprep.subr.mxu0 0.0
    %183 = vmatpush2.msra.mxu0 0.0
    %184 = vmatprep.subr.mxu0 0.0
    %185 = vmatpush2.msra.mxu0 0.0
    %186 = vmatprep.subr.mxu0 0.0
    %187 = vmatpush2.msra.mxu0 0.0
    %188 = vmatprep.subr.mxu0 0.0
    %189 = vmatpush2.msra.mxu0 0.0
    %190 = vmatprep.subr.mxu0 0.0
    %191 = vmatpush2.msra.mxu0 0.0
    %192 = vmatprep.subr.mxu0 0.0
    %193 = vmatpush2.msra.mxu0 0.0
    %194 = vmatprep.subr.mxu0 0.0
    %195 = vmatpush2.msra.mxu0 0.0
    %196 = vmatprep.subr.mxu0 0.0
    %197 = vmatpush2.msra.mxu0 0.0
    %198 = vmatprep.subr.mxu0 0.0
    %199 = vmatpush2.msra.mxu0 0.0
    %200 = vmatprep.subr.mxu0 0.0
    %201 = vmatpush2.msra.mxu0 0.0
    %202 = vmatprep.subr.mxu0 0.0
    %203 = vmatpush2.msra.mxu0 0.0
    %204 = vmatprep.subr.mxu0 0.0
    %205 = vmatpush2.msra.mxu0 0.0
    %206 = vmatprep.mubr.f32.mxu0 0.0
    %207 = vmatmul.mubr.f32.gmra.mxu0 %v140
    %v208 = vpop.f32.mrf.mxu0
    %v209 = vadd.f32 %v136, %v208
    %v210 = vpop.f32.mrf.mxu0
    %211 = vdwg.mxu0
    %v212 = vtanh.pop %v209
    %v213 = vld [vmem:[#allocation8] sm:$0xff]
    %v214 = vld [vmem:[#allocation8 + $0x8] sm:$0xff]
    %v215 = vld [vmem:[#allocation8 + $0x10] sm:$0xff]
    %v216 = vld [vmem:[#allocation8 + $0x18] sm:$0xff]
    %v217 = vld [vmem:[#allocation8 + $0x20] sm:$0xff]
    %v218 = vld [vmem:[#allocation8 + $0x28] sm:$0xff]
    %v219 = vld [vmem:[#allocation8 + $0x30] sm:$0xff]
    %v220 = vld [vmem:[#allocation8 + $0x38] sm:$0xff]
    %v221 = vld [vmem:[#allocation8 + $0x40] sm:$0xff]
    %v222 = vld [vmem:[#allocation8 + $0x48] sm:$0xff]
    %v223 = vld [vmem:[#allocation8 + $0x50] sm:$0xff]
    %v224 = vld [vmem:[#allocation8 + $0x58] sm:$0xff]
    %v225 = vld [vmem:[#allocation8 + $0x60] sm:$0xff]
    %v226 = vld [vmem:[#allocation8 + $0x68] sm:$0xff]
    %v227 = vld [vmem:[#allocation8 + $0x70] sm:$0xff]
    %v228 = vld [vmem:[#allocation8 + $0x78] sm:$0xff]
    %v229 = vld [vmem:[#allocation10] sm:$0xff]
    %v230 = vld [vmem:[#allocation10 + $0x8] sm:$0xff]
    %v231 = vld [vmem:[#allocation10 + $0x10] sm:$0xff]
    %v232 = vld [vmem:[#allocation10 + $0x18] sm:$0xff]
    %v233 = vld [vmem:[#allocation10 + $0x20] sm:$0xff]
    %v234 = vld [vmem:[#allocation10 + $0x28] sm:$0xff]
    %v235 = vld [vmem:[#allocation10 + $0x30] sm:$0xff]
    %v236 = vld [vmem:[#allocation10 + $0x38] sm:$0xff]
    %v237 = vld [vmem:[#allocation10 + $0x40] sm:$0xff]
    %v238 = vld [vmem:[#allocation10 + $0x48] sm:$0xff]
    %v239 = vld [vmem:[#allocation10 + $0x50] sm:$0xff]
    %v240 = vld [vmem:[#allocation10 + $0x58] sm:$0xff]
    %v241 = vld [vmem:[#allocation10 + $0x60] sm:$0xff]
    %v242 = vld [vmem:[#allocation10 + $0x68] sm:$0xff]
    %v243 = vld [vmem:[#allocation10 + $0x70] sm:$0xff]
    %v244 = vld [vmem:[#allocation10 + $0x78] sm:$0xff]
    %245 = vmatprep.subr.mxu0 0.0
    %246 = vmatpush1.msra.mxu0 %v244
    %247 = vmatprep.subr.mxu0 0.0
    %248 = vmatpush1.msra.mxu0 %v243
    %249 = vmatprep.subr.mxu0 0.0
    %250 = vmatpush1.msra.mxu0 %v242
    %251 = vmatprep.subr.mxu0 0.0
    %252 = vmatpush1.msra.mxu0 %v241
    %253 = vmatprep.subr.mxu0 0.0
    %254 = vmatpush1.msra.mxu0 %v240
    %255 = vmatprep.subr.mxu0 0.0
    %256 = vmatpush1.msra.mxu0 %v239
    %257 = vmatprep.subr.mxu0 0.0
    %258 = vmatpush1.msra.mxu0 %v238
    %259 = vmatprep.subr.mxu0 0.0
    %260 = vmatpush1.msra.mxu0 %v237
    %261 = vmatprep.subr.mxu0 0.0
    %262 = vmatpush1.msra.mxu0 %v236
    %263 = vmatprep.subr.mxu0 0.0
    %264 = vmatpush1.msra.mxu0 %v235
    %265 = vmatprep.subr.mxu0 0.0
    %266 = vmatpush1.msra.mxu0 %v234
    %267 = vmatprep.subr.mxu0 0.0
    %268 = vmatpush1.msra.mxu0 %v233
    %269 = vmatprep.subr.mxu0 0.0
    %270 = vmatpush1.msra.mxu0 %v232
    %271 = vmatprep.subr.mxu0 0.0
    %272 = vmatpush1.msra.mxu0 %v231
    %273 = vmatprep.subr.mxu0 0.0
    %274 = vmatpush1.msra.mxu0 %v230
    %275 = vmatprep.subr.mxu0 0.0
    %276 = vmatpush1.msra.mxu0 %v229
    %277 = vmatprep.subr.mxu0 0.0
    %278 = vmatpush2.msra.mxu0 0.0
    %279 = vmatprep.subr.mxu0 0.0
    %280 = vmatpush2.msra.mxu0 0.0
    %281 = vmatprep.subr.mxu0 0.0
    %282 = vmatpush2.msra.mxu0 0.0
    %283 = vmatprep.subr.mxu0 0.0
    %284 = vmatpush2.msra.mxu0 0.0
    %285 = vmatprep.subr.mxu0 0.0
    %286 = vmatpush2.msra.mxu0 0.0
    %287 = vmatprep.subr.mxu0 0.0
    %288 = vmatpush2.msra.mxu0 0.0
    %289 = vmatprep.subr.mxu0 0.0
    %290 = vmatpush2.msra.mxu0 0.0
    %291 = vmatprep.subr.mxu0 0.0
    %292 = vmatpush2.msra.mxu0 0.0
    %293 = vmatprep.subr.mxu0 0.0
    %294 = vmatpush2.msra.mxu0 0.0
    %295 = vmatprep.subr.mxu0 0.0
    %296 = vmatpush2.msra.mxu0 0.0
    %297 = vmatprep.subr.mxu0 0.0
    %298 = vmatpush2.msra.mxu0 0.0
    %299 = vmatprep.subr.mxu0 0.0
    %300 = vmatpush2.msra.mxu0 0.0
    %301 = vmatprep.subr.mxu0 0.0
    %302 = vmatpush2.msra.mxu0 0.0
    %303 = vmatprep.subr.mxu0 0.0
    %304 = vmatpush2.msra.mxu0 0.0
    %305 = vmatprep.subr.mxu0 0.0
    %306 = vmatpush2.msra.mxu0 0.0
    %307 = vmatprep.subr.mxu0 0.0
    %308 = vmatpush2.msra.mxu0 0.0
    %309 = vmatprep.mubr.f32.mxu0 0.0
    %310 = vmatmul.mubr.f32.gmra.mxu0 %v212
    %v311 = vpop.f32.mrf.mxu0
    %v312 = vadd.f32 0.0, %v311
    %v313 = vpop.f32.mrf.mxu0
    %314 = vdwg.mxu0
    %315 = vmatprep.subr.mxu0 0.0
    %316 = vmatpush1.msra.mxu0 %v228
    %317 = vmatprep.subr.mxu0 0.0
    %318 = vmatpush1.msra.mxu0 %v227
    %319 = vmatprep.subr.mxu0 0.0
    %320 = vmatpush1.msra.mxu0 %v226
    %321 = vmatprep.subr.mxu0 0.0
    %322 = vmatpush1.msra.mxu0 %v225
    %323 = vmatprep.subr.mxu0 0.0
    %324 = vmatpush1.msra.mxu0 %v224
    %325 = vmatprep.subr.mxu0 0.0
    %326 = vmatpush1.msra.mxu0 %v223
    %327 = vmatprep.subr.mxu0 0.0
    %328 = vmatpush1.msra.mxu0 %v222
    %329 = vmatprep.subr.mxu0 0.0
    %330 = vmatpush1.msra.mxu0 %v221
    %331 = vmatprep.subr.mxu0 0.0
    %332 = vmatpush1.msra.mxu0 %v220
    %333 = vmatprep.subr.mxu0 0.0
    %334 = vmatpush1.msra.mxu0 %v219
    %335 = vmatprep.subr.mxu0 0.0
    %336 = vmatpush1.msra.mxu0 %v218
    %337 = vmatprep.subr.mxu0 0.0
    %338 = vmatpush1.msra.mxu0 %v217
    %339 = vmatprep.subr.mxu0 0.0
    %340 = vmatpush1.msra.mxu0 %v216
    %341 = vmatprep.subr.mxu0 0.0
    %342 = vmatpush1.msra.mxu0 %v215
    %343 = vmatprep.subr.mxu0 0.0
    %344 = vmatpush1.msra.mxu0 %v214
    %345 = vmatprep.subr.mxu0 0.0
    %346 = vmatpush1.msra.mxu0 %v213
    %347 = vmatprep.subr.mxu0 0.0
    %348 = vmatpush2.msra.mxu0 0.0
    %349 = vmatprep.subr.mxu0 0.0
    %350 = vmatpush2.msra.mxu0 0.0
    %351 = vmatprep.subr.mxu0 0.0
    %352 = vmatpush2.msra.mxu0 0.0
    %353 = vmatprep.subr.mxu0 0.0
    %354 = vmatpush2.msra.mxu0 0.0
    %355 = vmatprep.subr.mxu0 0.0
    %356 = vmatpush2.msra.mxu0 0.0
    %357 = vmatprep.subr.mxu0 0.0
    %358 = vmatpush2.msra.mxu0 0.0
    %359 = vmatprep.subr.mxu0 0.0
    %360 = vmatpush2.msra.mxu0 0.0
    %361 = vmatprep.subr.mxu0 0.0
    %362 = vmatpush2.msra.mxu0 0.0
    %363 = vmatprep.subr.mxu0 0.0
    %364 = vmatpush2.msra.mxu0 0.0
    %365 = vmatprep.subr.mxu0 0.0
    %366 = vmatpush2.msra.mxu0 0.0
    %367 = vmatprep.subr.mxu0 0.0
    %368 = vmatpush2.msra.mxu0 0.0
    %369 = vmatprep.subr.mxu0 0.0
    %370 = vmatpush2.msra.mxu0 0.0
    %371 = vmatprep.subr.mxu0 0.0
    %372 = vmatpush2.msra.mxu0 0.0
    %373 = vmatprep.subr.mxu0 0.0
    %374 = vmatpush2.msra.mxu0 0.0
    %375 = vmatprep.subr.mxu0 0.0
    %376 = vmatpush2.msra.mxu0 0.0
    %377 = vmatprep.subr.mxu0 0.0
    %378 = vmatpush2.msra.mxu0 0.0
    %379 = vmatprep.mubr.f32.mxu0 0.0
    %380 = vmatmul.mubr.f32.gmra.mxu0 %v128
    %v381 = vpop.f32.mrf.mxu0
    %v382 = vadd.f32 %v312, %v381
    %v383 = vpop.f32.mrf.mxu0
    %384 = vdwg.mxu0
    %v385 = vld [vmem:[%s6] sm:$0x1]
    %v387 = vlaneseq
    %v388 = vshrl.u32 %v387, 7
    %v389 = vsub.s32 0, %v388
    %v390 = vrot.slane %v385, %v389
    %v392 = vadd.f32 %v382, %v390
    %v393 = vtanh.pop %v392
    %v394 = vld [vmem:[#allocation11] sm:$0xff]
    %v395 = vld [vmem:[#allocation11 + $0x8] sm:$0xff]
    %v396 = vld [vmem:[#allocation11 + $0x10] sm:$0xff]
    %v397 = vld [vmem:[#allocation11 + $0x18] sm:$0xff]
    %v398 = vld [vmem:[#allocation11 + $0x20] sm:$0xff]
    %v399 = vld [vmem:[#allocation11 + $0x28] sm:$0xff]
    %v400 = vld [vmem:[#allocation11 + $0x30] sm:$0xff]
    %v401 = vld [vmem:[#allocation11 + $0x38] sm:$0xff]
    %v402 = vld [vmem:[#allocation11 + $0x40] sm:$0xff]
    %v403 = vld [vmem:[#allocation11 + $0x48] sm:$0xff]
    %v404 = vld [vmem:[#allocation11 + $0x50] sm:$0xff]
    %v405 = vld [vmem:[#allocation11 + $0x58] sm:$0xff]
    %v406 = vld [vmem:[#allocation11 + $0x60] sm:$0xff]
    %v407 = vld [vmem:[#allocation11 + $0x68] sm:$0xff]
    %v408 = vld [vmem:[#allocation11 + $0x70] sm:$0xff]
    %v409 = vld [vmem:[#allocation11 + $0x78] sm:$0xff]
    %v410 = vld [vmem:[%s8] sm:$0x1]
    %v412 = vlaneseq
    %v413 = vshrl.u32 %v412, 7
    %v414 = vsub.s32 0, %v413
    %v415 = vrot.slane %v410, %v414
    %417 = vmatprep.subr.mxu0 0.0
    %418 = vmatpush1.msra.mxu0 %v409
    %419 = vmatprep.subr.mxu0 0.0
    %420 = vmatpush1.msra.mxu0 %v408
    %421 = vmatprep.subr.mxu0 0.0
    %422 = vmatpush1.msra.mxu0 %v407
    %423 = vmatprep.subr.mxu0 0.0
    %424 = vmatpush1.msra.mxu0 %v406
    %425 = vmatprep.subr.mxu0 0.0
    %426 = vmatpush1.msra.mxu0 %v405
    %427 = vmatprep.subr.mxu0 0.0
    %428 = vmatpush1.msra.mxu0 %v404
    %429 = vmatprep.subr.mxu0 0.0
    %430 = vmatpush1.msra.mxu0 %v403
    %431 = vmatprep.subr.mxu0 0.0
    %432 = vmatpush1.msra.mxu0 %v402
    %433 = vmatprep.subr.mxu0 0.0
    %434 = vmatpush1.msra.mxu0 %v401
    %435 = vmatprep.subr.mxu0 0.0
    %436 = vmatpush1.msra.mxu0 %v400
    %437 = vmatprep.subr.mxu0 0.0
    %438 = vmatpush1.msra.mxu0 %v399
    %439 = vmatprep.subr.mxu0 0.0
    %440 = vmatpush1.msra.mxu0 %v398
    %441 = vmatprep.subr.mxu0 0.0
    %442 = vmatpush1.msra.mxu0 %v397
    %443 = vmatprep.subr.mxu0 0.0
    %444 = vmatpush1.msra.mxu0 %v396
    %445 = vmatprep.subr.mxu0 0.0
    %446 = vmatpush1.msra.mxu0 %v395
    %447 = vmatprep.subr.mxu0 0.0
    %448 = vmatpush1.msra.mxu0 %v394
    %449 = vmatprep.subr.mxu0 0.0
    %450 = vmatpush2.msra.mxu0 0.0
    %451 = vmatprep.subr.mxu0 0.0
    %452 = vmatpush2.msra.mxu0 0.0
    %453 = vmatprep.subr.mxu0 0.0
    %454 = vmatpush2.msra.mxu0 0.0
    %455 = vmatprep.subr.mxu0 0.0
    %456 = vmatpush2.msra.mxu0 0.0
    %457 = vmatprep.subr.mxu0 0.0
    %458 = vmatpush2.msra.mxu0 0.0
    %459 = vmatprep.subr.mxu0 0.0
    %460 = vmatpush2.msra.mxu0 0.0
    %461 = vmatprep.subr.mxu0 0.0
    %462 = vmatpush2.msra.mxu0 0.0
    %463 = vmatprep.subr.mxu0 0.0
    %464 = vmatpush2.msra.mxu0 0.0
    %465 = vmatprep.subr.mxu0 0.0
    %466 = vmatpush2.msra.mxu0 0.0
    %467 = vmatprep.subr.mxu0 0.0
    %468 = vmatpush2.msra.mxu0 0.0
    %469 = vmatprep.subr.mxu0 0.0
    %470 = vmatpush2.msra.mxu0 0.0
    %471 = vmatprep.subr.mxu0 0.0
    %472 = vmatpush2.msra.mxu0 0.0
    %473 = vmatprep.subr.mxu0 0.0
    %474 = vmatpush2.msra.mxu0 0.0
    %475 = vmatprep.subr.mxu0 0.0
    %476 = vmatpush2.msra.mxu0 0.0
    %477 = vmatprep.subr.mxu0 0.0
    %478 = vmatpush2.msra.mxu0 0.0
    %479 = vmatprep.subr.mxu0 0.0
    %480 = vmatpush2.msra.mxu0 0.0
    %481 = vmatprep.mubr.f32.mxu0 0.0
    %482 = vmatmul.mubr.f32.gmra.mxu0 %v393
    %v483 = vpop.f32.mrf.mxu0
    %v484 = vadd.f32 %v415, %v483
    %v485 = vpop.f32.mrf.mxu0
    %486 = vdwg.mxu0
    %v487 = vtanh.pop %v484
    %v488 = vld [vmem:[#allocation13] sm:$0xff]
    %v489 = vld [vmem:[#allocation13 + $0x8] sm:$0xff]
    %v490 = vld [vmem:[#allocation13 + $0x10] sm:$0xff]
    %v491 = vld [vmem:[#allocation13 + $0x18] sm:$0xff]
    %v492 = vld [vmem:[#allocation13 + $0x20] sm:$0xff]
    %v493 = vld [vmem:[#allocation13 + $0x28] sm:$0xff]
    %v494 = vld [vmem:[#allocation13 + $0x30] sm:$0xff]
    %v495 = vld [vmem:[#allocation13 + $0x38] sm:$0xff]
    %v496 = vld [vmem:[#allocation13 + $0x40] sm:$0xff]
    %v497 = vld [vmem:[#allocation13 + $0x48] sm:$0xff]
    %v498 = vld [vmem:[#allocation13 + $0x50] sm:$0xff]
    %v499 = vld [vmem:[#allocation13 + $0x58] sm:$0xff]
    %v500 = vld [vmem:[#allocation13 + $0x60] sm:$0xff]
    %v501 = vld [vmem:[#allocation13 + $0x68] sm:$0xff]
    %v502 = vld [vmem:[#allocation13 + $0x70] sm:$0xff]
    %v503 = vld [vmem:[#allocation13 + $0x78] sm:$0xff]
    %v504 = vld [vmem:[%s10] sm:$0x1]
    %v506 = vlaneseq
    %v507 = vshrl.u32 %v506, 7
    %v508 = vsub.s32 0, %v507
    %v509 = vrot.slane %v504, %v508
    %511 = vmatprep.subr.mxu0 0.0
    %512 = vmatpush1.msra.mxu0 %v503
    %513 = vmatprep.subr.mxu0 0.0
    %514 = vmatpush1.msra.mxu0 %v502
    %515 = vmatprep.subr.mxu0 0.0
    %516 = vmatpush1.msra.mxu0 %v501
    %517 = vmatprep.subr.mxu0 0.0
    %518 = vmatpush1.msra.mxu0 %v500
    %519 = vmatprep.subr.mxu0 0.0
    %520 = vmatpush1.msra.mxu0 %v499
    %521 = vmatprep.subr.mxu0 0.0
    %522 = vmatpush1.msra.mxu0 %v498
    %523 = vmatprep.subr.mxu0 0.0
    %524 = vmatpush1.msra.mxu0 %v497
    %525 = vmatprep.subr.mxu0 0.0
    %526 = vmatpush1.msra.mxu0 %v496
    %527 = vmatprep.subr.mxu0 0.0
    %528 = vmatpush1.msra.mxu0 %v495
    %529 = vmatprep.subr.mxu0 0.0
    %530 = vmatpush1.msra.mxu0 %v494
    %531 = vmatprep.subr.mxu0 0.0
    %532 = vmatpush1.msra.mxu0 %v493
    %533 = vmatprep.subr.mxu0 0.0
    %534 = vmatpush1.msra.mxu0 %v492
    %535 = vmatprep.subr.mxu0 0.0
    %536 = vmatpush1.msra.mxu0 %v491
    %537 = vmatprep.subr.mxu0 0.0
    %538 = vmatpush1.msra.mxu0 %v490
    %539 = vmatprep.subr.mxu0 0.0
    %540 = vmatpush1.msra.mxu0 %v489
    %541 = vmatprep.subr.mxu0 0.0
    %542 = vmatpush1.msra.mxu0 %v488
    %543 = vmatprep.subr.mxu0 0.0
    %544 = vmatpush2.msra.mxu0 0.0
    %545 = vmatprep.subr.mxu0 0.0
    %546 = vmatpush2.msra.mxu0 0.0
    %547 = vmatprep.subr.mxu0 0.0
    %548 = vmatpush2.msra.mxu0 0.0
    %549 = vmatprep.subr.mxu0 0.0
    %550 = vmatpush2.msra.mxu0 0.0
    %551 = vmatprep.subr.mxu0 0.0
    %552 = vmatpush2.msra.mxu0 0.0
    %553 = vmatprep.subr.mxu0 0.0
    %554 = vmatpush2.msra.mxu0 0.0
    %555 = vmatprep.subr.mxu0 0.0
    %556 = vmatpush2.msra.mxu0 0.0
    %557 = vmatprep.subr.mxu0 0.0
    %558 = vmatpush2.msra.mxu0 0.0
    %559 = vmatprep.subr.mxu0 0.0
    %560 = vmatpush2.msra.mxu0 0.0
    %561 = vmatprep.subr.mxu0 0.0
    %562 = vmatpush2.msra.mxu0 0.0
    %563 = vmatprep.subr.mxu0 0.0
    %564 = vmatpush2.msra.mxu0 0.0
    %565 = vmatprep.subr.mxu0 0.0
    %566 = vmatpush2.msra.mxu0 0.0
    %567 = vmatprep.subr.mxu0 0.0
    %568 = vmatpush2.msra.mxu0 0.0
    %569 = vmatprep.subr.mxu0 0.0
    %570 = vmatpush2.msra.mxu0 0.0
    %571 = vmatprep.subr.mxu0 0.0
    %572 = vmatpush2.msra.mxu0 0.0
    %573 = vmatprep.subr.mxu0 0.0
    %574 = vmatpush2.msra.mxu0 0.0
    %575 = vmatprep.mubr.f32.mxu0 0.0
    %576 = vmatmul.mubr.f32.gmra.mxu0 %v487
    %v577 = vpop.f32.mrf.mxu0
    %v578 = vadd.f32 %v509, %v577
    %v579 = vpop.f32.mrf.mxu0
    %580 = vdwg.mxu0
    %581 = vst [vmem:[#allocation14] sm:$0x3] %v578
    // Predicated region
    $region74: #{tpu_custom_call.1} parent=1 // pred_check
      _
    $region75: #{tpu_custom_call.1} parent=1 // pred_check_branch
      %583 = sbr.rel (0) target = $region77
    $region76: #{tpu_custom_call.1} parent=1 // pred_region
      %s585 = ssub.s32 32, 32
      %586 = vsyncadd [#allocation4], %s585
      %s588 = sshll.u32 [#allocation14], 4
      %s589 = int_to_ptr.vmem [resolvable:$true] %s588
      %591 = dma.vmem_to_hbm [thread:$0]  %s589, 32, %s11, [#allocation4]
    $region77: #{tpu_custom_call.1} parent=1 // pred_fallthru
      _
    // Predicated region
    $region78: #{tpu_custom_call.1} parent=1 // pred_check
      _
    $region79: #{tpu_custom_call.1} parent=1 // pred_check_branch
      %593 = sbr.rel (0) target = $region81
    $region80: #{tpu_custom_call.1} parent=1 // pred_region
      %594 = dma.done [#allocation4], 32
    $region81: #{tpu_custom_call.1} parent=1 // pred_fallthru
      _
    %595 = vsyncpa [#allocation3], 1
    %596 = vsyncpa [#allocation6], 1
    %597 = vsyncpa [#allocation9], 1
    %598 = vsyncpa [#allocation12], 1
    %599 = vsyncpa [#allocation4], 1

</llo_original>
